<compile_context>
chip_gen: v6e
topology: v6e:2x2x1
jax: 0.10.0
libtpu: 0.0.40
codegen_flags: <defaults>
</compile_context>

<pallas_src>
import jax
import jax.numpy as jnp
from jax.experimental import pallas as pl
from jax.experimental.pallas import tpu as pltpu


def linear_tanh_kernel(x_ref, wb_ref, o_ref):
    # x_ref : (M, K) f32 in VMEM
    # wb_ref: (K+1,) f32 in SMEM — [w0, ..., w_{K-1}, b] (N == 1)
    # o_ref : (M, 1) f32 in VMEM
    K = x_ref.shape[1]
    x = x_ref[...]
    # Unrolled K-step VPU multiply-accumulate with SMEM scalar weights.
    acc = x[:, 0:1] * wb_ref[0]
    for k in range(1, K):
        acc = acc + x[:, k:k + 1] * wb_ref[k]
    b = wb_ref[K]
    o_ref[...] = jnp.tanh(acc + b).astype(o_ref.dtype)


def linear_tanh(x, w, b):
    """x: (M, K) f32, w: (N=1, K) f32, b: (N=1,) f32 -> (M, 1) f32."""
    M, K = x.shape
    N = w.shape[0]
    assert N == 1, "elementwise MAC formulation only valid for out_features == 1"
    # Pack weights + bias into a single small SMEM scalar operand (f32[K+1]).
    wb = jnp.concatenate([w.reshape(-1), b.reshape(-1)]).astype(jnp.float32)
    return pl.pallas_call(
        linear_tanh_kernel,
        out_shape=jax.ShapeDtypeStruct((M, N), jnp.float32),
        in_specs=[
            pl.BlockSpec(memory_space=pltpu.MemorySpace.VMEM),   # x
            pl.BlockSpec(memory_space=pltpu.MemorySpace.SMEM),   # [w..., b]
        ],
        out_specs=pl.BlockSpec(memory_space=pltpu.MemorySpace.VMEM),
    )(x, wb)


if __name__ == "__main__":
    key = jax.random.PRNGKey(0)
    kx, kw, kb = jax.random.split(key, 3)

    # Module: Linear(in_features=4, out_features=1), input x of shape (3, 4).
    M, K, N = 3, 4, 1
    x = jax.random.normal(kx, (M, K), dtype=jnp.float32)
    # Deterministic param init (uniform like PyTorch's default range 1/sqrt(K)).
    bound = 1.0 / jnp.sqrt(K)
    w = jax.random.uniform(kw, (N, K), minval=-bound, maxval=bound, dtype=jnp.float32)
    b = jax.random.uniform(kb, (N,), minval=-bound, maxval=bound, dtype=jnp.float32)

    out = linear_tanh(x, w, b)
    jax.block_until_ready(out)

    # Reference check against plain JAX.
    ref = jnp.tanh(x @ w.T + b)
    assert out.shape == (M, N)
    assert jnp.allclose(out, ref, atol=1e-5, rtol=1e-5)
    print("KERNEL_OK")
</pallas_src>

<mosaic_0001>
module attributes {stable_mosaic.version = 11 : i64} {
  func.func @linear_tanh_kernel(%arg0: memref<3x4xf32, #tpu.memory_space<vmem>>, %arg1: memref<5xf32, #tpu.memory_space<smem>>, %arg2: memref<3x1xf32, #tpu.memory_space<vmem>>) attributes {dimension_semantics = [], scalar_prefetch = 0 : i64, scratch_operands = 0 : i64, tpu.core_type = #tpu.core_type<tc>} {
    %c0 = arith.constant 0 : index
    %c0_0 = arith.constant 0 : index
    %0 = vector.load %arg0[%c0, %c0_0] : memref<3x4xf32, #tpu.memory_space<vmem>>, vector<3x4xf32>
    %1 = vector.extract_strided_slice %0 {offsets = [0, 0], sizes = [3, 1], strides = [1, 1]} : vector<3x4xf32> to vector<3x1xf32>
    %c0_1 = arith.constant 0 : index
    %2 = memref.load %arg1[%c0_1] : memref<5xf32, #tpu.memory_space<smem>>
    %3 = vector.broadcast %2 : f32 to vector<3x1xf32>
    %4 = arith.mulf %1, %3 : vector<3x1xf32>
    %5 = vector.extract_strided_slice %0 {offsets = [0, 1], sizes = [3, 1], strides = [1, 1]} : vector<3x4xf32> to vector<3x1xf32>
    %c1 = arith.constant 1 : index
    %6 = memref.load %arg1[%c1] : memref<5xf32, #tpu.memory_space<smem>>
    %7 = vector.broadcast %6 : f32 to vector<3x1xf32>
    %8 = arith.mulf %5, %7 : vector<3x1xf32>
    %9 = arith.addf %4, %8 : vector<3x1xf32>
    %10 = vector.extract_strided_slice %0 {offsets = [0, 2], sizes = [3, 1], strides = [1, 1]} : vector<3x4xf32> to vector<3x1xf32>
    %c2 = arith.constant 2 : index
    %11 = memref.load %arg1[%c2] : memref<5xf32, #tpu.memory_space<smem>>
    %12 = vector.broadcast %11 : f32 to vector<3x1xf32>
    %13 = arith.mulf %10, %12 : vector<3x1xf32>
    %14 = arith.addf %9, %13 : vector<3x1xf32>
    %15 = vector.extract_strided_slice %0 {offsets = [0, 3], sizes = [3, 1], strides = [1, 1]} : vector<3x4xf32> to vector<3x1xf32>
    %c3 = arith.constant 3 : index
    %16 = memref.load %arg1[%c3] : memref<5xf32, #tpu.memory_space<smem>>
    %17 = vector.broadcast %16 : f32 to vector<3x1xf32>
    %18 = arith.mulf %15, %17 : vector<3x1xf32>
    %19 = arith.addf %14, %18 : vector<3x1xf32>
    %c4 = arith.constant 4 : index
    %20 = memref.load %arg1[%c4] : memref<5xf32, #tpu.memory_space<smem>>
    %21 = vector.broadcast %20 : f32 to vector<3x1xf32>
    %22 = arith.addf %19, %21 : vector<3x1xf32>
    %23 = math.tanh %22 : vector<3x1xf32>
    %c0_2 = arith.constant 0 : index
    %c0_3 = arith.constant 0 : index
    %24 = vector.load %arg2[%c0_2, %c0_3] : memref<3x1xf32, #tpu.memory_space<vmem>>, vector<3x1xf32>
    tpu.vector_store %arg2[%c0_2, %c0_3], %23 {strides = array<i32>} : memref<3x1xf32, #tpu.memory_space<vmem>>, vector<3x1xf32>,
    return
  }
}

</mosaic_0001>

<llo_original>
// kernel: tpu_custom_call.1
$region0: #{tpu_custom_call.1}
  #allocation0 [shape = 'u32[]', space=smem, size = 0x4, offset = 0x4, fixed_abs, tag = 'smem constant byte address 0x4 - core index']
  #allocation1 [shape = 'u32[144,128]{1,0:T(1,128)}', space=vmem, size = 0x12000, scoped, tag = 'internal scratch']
  %s0 = inlined_call_operand.hbm [shape: f32[3,4], index: 0, kind: input, shape index: {}]
  %s1 = inlined_call_operand.vmem [shape: f32[5], index: 1, kind: input, shape index: {}]
  %s2 = inlined_call_operand.vmem [shape: f32[3,1], index: 2, kind: output, shape index: {}]
  %s3 = sld [smem:[#allocation0]]
  $region26: #{tpu_custom_call.1} parent=0
    _
  %s5 = ssub.s32 1, %s3
  %s6 = scalar_select 0, %s5, %s3
  $region1: #{tpu_custom_call.1} parent=0
    #allocation2 [shape = 'u8[2048]{0}', space=vmem, size = 0x800, scoped, tag = 'input window, operand 0, single buffered']
    #allocation3 [shape = 's32[1]{0}', space=sflag, size = 0x4, scoped, tag = 'scoped memory for tpu_custom_call.1']
    #allocation4 [shape = 's32[1]{0}', space=sflag, size = 0x4, scoped, tag = 'scoped memory for tpu_custom_call.1']
    #allocation5 [shape = 'u8[512]{0}', space=smem, size = 0x200, scoped, tag = 'input window, operand 1, single buffered']
    %7 = vsyncpa [#allocation3], 0
    %8 = vsyncpa [#allocation4], 0
    // Predicated region
    $region2: #{tpu_custom_call.1} parent=1 // pred_check
      _
    $region3: #{tpu_custom_call.1} parent=1 // pred_check_branch
      %10 = sbr.rel (0) target = $region5
    $region4: #{tpu_custom_call.1} parent=1 // pred_region
      %s12 = ssub.s32 64, 64
      %13 = vsyncadd [#allocation3], %s12
      %s15 = sshll.u32 [#allocation2], 4
      %s16 = int_to_ptr.vmem [resolvable:$true] %s15
      %18 = dma.hbm_to_vmem [thread:$0]  %s0, 64, %s16, [#allocation3]
    $region5: #{tpu_custom_call.1} parent=1 // pred_fallthru
      _
    // Predicated region
    $region6: #{tpu_custom_call.1} parent=1 // pred_check
      _
    $region7: #{tpu_custom_call.1} parent=1 // pred_check_branch
      %20 = sbr.rel (0) target = $region9
    $region8: #{tpu_custom_call.1} parent=1 // pred_region
      %s22 = ssub.s32 16, 16
      %23 = vsyncadd [#allocation4], %s22
      %s25 = sshll.u32 %s1, 4
      %s26 = int_to_ptr.vmem [resolvable:$true] %s25
      %28 = dma.vmem_to_smem %s26, 16, [#allocation5], [#allocation4]
    $region9: #{tpu_custom_call.1} parent=1 // pred_fallthru
      _
    // Predicated region
    $region10: #{tpu_custom_call.1} parent=1 // pred_check
      _
    $region11: #{tpu_custom_call.1} parent=1 // pred_check_branch
      %30 = sbr.rel (0) target = $region13
    $region12: #{tpu_custom_call.1} parent=1 // pred_region
      %31 = dma.done [#allocation3], 64
    $region13: #{tpu_custom_call.1} parent=1 // pred_fallthru
      _
    // Predicated region
    $region14: #{tpu_custom_call.1} parent=1 // pred_check
      _
    $region15: #{tpu_custom_call.1} parent=1 // pred_check_branch
      %33 = sbr.rel (0) target = $region17
    $region16: #{tpu_custom_call.1} parent=1 // pred_region
      %34 = dma.done [#allocation4], 16
    $region17: #{tpu_custom_call.1} parent=1 // pred_fallthru
      _
    %35 = sfence
    %v36 = vld [vmem:[#allocation2] sm:$0x7]
    %s37 = sld [smem:[#allocation5]]
    %v38 = vstv %s37
    %v39 = vmul.f32 %v36, %v38
    %s40 = sld [smem:[#allocation5 + $0x1]]
    %v41 = vstv %s40
    %v42 = vmul.f32 %v36, %v41
    %44 = vrot.lane.b32.xlu0 %v42, 127
    %v45 = vpop.permute.xlu0 %44
    %v47 = vadd.f32 %v39, %v45
    %s48 = sld [smem:[#allocation5 + $0x2]]
    %v49 = vstv %s48
    %v50 = vmul.f32 %v36, %v49
    %52 = vrot.lane.b32.xlu0 %v50, 126
    %v53 = vpop.permute.xlu0 %52
    %v55 = vadd.f32 %v47, %v53
    %s56 = sld [smem:[#allocation5 + $0x3]]
    %v57 = vstv %s56
    %v58 = vmul.f32 %v36, %v57
    %60 = vrot.lane.b32.xlu0 %v58, 125
    %v61 = vpop.permute.xlu0 %60
    %v63 = vadd.f32 %v55, %v61
    %s64 = sld [smem:[#allocation5 + $0x4]]
    %v65 = vstv %s64
    %v66 = vadd.f32 %v63, %v65
    %v67 = vtanh.pop %v66
    %vm68 = vcmask 2048
    %69 = vst.msk [vmem:[%s2] sm:$0x7] %vm68, %v67
    // Predicated region
    $region18: #{tpu_custom_call.1} parent=1 // pred_check
      _
    $region19: #{tpu_custom_call.1} parent=1 // pred_check_branch
      %71 = sbr.rel (0) target = $region21
    $region20: #{tpu_custom_call.1} parent=1 // pred_region
      _
    $region21: #{tpu_custom_call.1} parent=1 // pred_fallthru
      _
    // Predicated region
    $region22: #{tpu_custom_call.1} parent=1 // pred_check
      _
    $region23: #{tpu_custom_call.1} parent=1 // pred_check_branch
      %73 = sbr.rel (0) target = $region25
    $region24: #{tpu_custom_call.1} parent=1 // pred_region
      _
    $region25: #{tpu_custom_call.1} parent=1 // pred_fallthru
      _
    %74 = vsyncpa [#allocation3], 1
    %75 = vsyncpa [#allocation4], 1

</llo_original>
